<compile_context>
chip_gen: v7x
topology: tpu7x:2x2x1
jax: 0.10.0
libtpu: 0.0.40
codegen_flags: <defaults>
</compile_context>

<pallas_src>
import math

import jax
import jax.numpy as jnp
from jax.experimental import pallas as pl
from jax.experimental.pallas import tpu as pltpu


def _layer_scale_kernel(x_ref, g_ref, o_ref):
    # x_ref: (tr, tile_d), g_ref: (1, lane_dim), o_ref: (tr, tile_d)
    tile_d = x_ref.shape[-1]
    if g_ref.shape[-1] == tile_d:
        # Common case: the lane axis is not split; gamma block == x block width.
        g = g_ref[...]
    else:
        # Lane axis split: gamma was DMA'd once at full width; take this tile's
        # slice. tile_d divides lane_dim (enforced by the wrapper) -> in bounds.
        start = pl.multiple_of(pl.program_id(1) * tile_d, 128)
        g = g_ref[:, pl.ds(start, tile_d)]
    # Multiply in the promoted dtype (carried by gamma), store in out dtype.
    o_ref[...] = (x_ref[...].astype(g_ref.dtype) * g).astype(o_ref.dtype)


def _round_down(x: int, m: int) -> int:
    return (x // m) * m


def _round_up(x: int, m: int) -> int:
    return ((x + m - 1) // m) * m


def _chip_profile():
    """Best-effort per-generation tuning knobs (block bytes, VMEM limit, #TCs)."""
    kind = ""
    try:
        kind = (getattr(jax.devices()[0], "device_kind", "") or "").lower()
    except Exception:
        pass
    if "v7" in kind:   # 2 TC/chip, 64 MiB VMEM/TC, ~3.2 TB/s HBM
        return {"two_tc": True, "block_bytes": 8 << 20, "vmem_limit": 48 << 20}
    if "v6" in kind:   # 1 TC, 128 MiB physical VMEM
        return {"two_tc": False, "block_bytes": 8 << 20, "vmem_limit": 64 << 20}
    if "v5" in kind:   # v5e: 1 TC, 16 MiB scoped default -> raise to 32 MiB
        return {"two_tc": False, "block_bytes": 4 << 20, "vmem_limit": 32 << 20}
    # Unknown chip: conservative settings legal on every generation.
    return {"two_tc": False, "block_bytes": 4 << 20, "vmem_limit": 32 << 20}


def layer_scale(x: jax.Array, gamma: jax.Array, *,
                out_dtype=None,
                target_block_bytes=None,
                vmem_limit_bytes=None) -> jax.Array:
    """Apply per-channel scaling x * gamma (gamma broadcasts over the last dim)."""
    orig_shape = x.shape
    dim = orig_shape[-1]
    assert gamma.shape == (dim,), f"gamma must be ({dim},), got {gamma.shape}"
    assert jnp.issubdtype(x.dtype, jnp.floating), "x must be floating point"
    assert jnp.issubdtype(gamma.dtype, jnp.floating), "gamma must be floating point"

    prof = _chip_profile()
    if target_block_bytes is None:
        target_block_bytes = prof["block_bytes"]
    if vmem_limit_bytes is None:
        vmem_limit_bytes = prof["vmem_limit"]

    # Arithmetic follows PyTorch `x * gamma` promotion; the stored output dtype
    # may be narrowed explicitly (opt-in) to halve HBM write bytes.
    compute_dtype = jnp.result_type(x.dtype, gamma.dtype)
    out_dtype = jnp.dtype(out_dtype) if out_dtype is not None else compute_dtype

    itemsize_in = jnp.dtype(x.dtype).itemsize
    itemsize_out = jnp.dtype(out_dtype).itemsize
    io_itemsize = max(itemsize_in, itemsize_out)
    # Sublane alignment: 8 for 32-bit, 16 for 16-bit, 32 for 8-bit dtypes.
    row_align = max(8, 32 // min(itemsize_in, itemsize_out))

    # Flatten all leading dims onto rows; last dim stays on lanes.
    x2d = x.reshape(-1, dim)
    rows = x2d.shape[0]
    g_row = gamma.astype(compute_dtype)

    # --- Lane-density plumbing: always present a last dim that is a multiple
    #     of 128 so output stores are unmasked full-lane `vst`.
    pad_rows = 0
    pad_d = 0
    rep = 1
    if dim % 128 == 0:
        lane_dim = dim
        packed_rows = rows
    elif 128 % dim == 0:
        # Small divisor of 128: pack `rep` logical rows per 128-wide lane row.
        rep = 128 // dim
        pad_rows = (-rows) % rep
        if pad_rows:
            x2d = jnp.pad(x2d, ((0, pad_rows), (0, 0)))
        packed_rows = (rows + pad_rows) // rep
        lane_dim = 128
        x2d = x2d.reshape(packed_rows, lane_dim)
        g_row = jnp.tile(g_row, rep)
    else:
        # Odd hidden dim (e.g. 48, 80, 96): pad the lane axis to the next
        # multiple of 128 and slice back afterwards (cheaper than masked stores).
        pad_d = (-dim) % 128
        lane_dim = dim + pad_d
        packed_rows = rows
        x2d = jnp.pad(x2d, ((0, 0), (0, pad_d)))
        g_row = jnp.pad(g_row, (0, pad_d))
    g_row = g_row.reshape(1, lane_dim)

    # --- Lane (D) tiling: keep full D unless a minimal-height block would blow
    #     the per-block byte budget; then split D in 128-multiples that divide
    #     lane_dim evenly (keeps the in-kernel gamma slice in bounds).
    if lane_dim % 128 == 0:
        max_tile_d = max(128, _round_down(
            max(target_block_bytes // (row_align * io_itemsize), 128), 128))
        tile_d = min(lane_dim, max_tile_d)
        if lane_dim % tile_d != 0:
            tile_d = math.gcd(lane_dim, tile_d)  # multiple of 128, divides lane_dim
    else:  # defensive — lane_dim is always a multiple of 128 above
        tile_d = lane_dim
    grid_d = pl.cdiv(lane_dim, tile_d)

    # --- Row tiling: size by bytes (~target_block_bytes per block), rounded to
    #     the sublane alignment.
    bytes_per_row = tile_d * io_itemsize
    tr = max(row_align, _round_down(max(target_block_bytes // bytes_per_row, 1),
                                    row_align))
    if tr >= packed_rows:
        if prof["two_tc"] and grid_d == 1 and packed_rows >= 4 * row_align:
            # 2-TC chips (v7x): ~4 row steps -> >=2 pipelined steps per core so
            # input DMA / compute / output DMA overlap inside each core.
            tr = max(row_align, _round_up(pl.cdiv(packed_rows, 4), row_align))
        else:
            # 1-TC chips: single full-array block, no pointless extra grid step.
            tr = packed_rows
    tr = min(tr, packed_rows)

    grid = (pl.cdiv(packed_rows, tr), grid_d)

    out_packed = pl.pallas_call(
        _layer_scale_kernel,
        out_shape=jax.ShapeDtypeStruct((packed_rows, lane_dim), out_dtype),
        grid_spec=pltpu.PrefetchScalarGridSpec(
            num_scalar_prefetch=0,
            grid=grid,
            in_specs=[
                pl.BlockSpec((tr, tile_d), lambda i, j: (i, j)),
                # gamma: full-width block, constant index map -> DMA'd once.
                pl.BlockSpec((1, lane_dim), lambda i, j: (0, 0)),
            ],
            out_specs=pl.BlockSpec((tr, tile_d), lambda i, j: (i, j)),
        ),
        compiler_params=pltpu.CompilerParams(
            dimension_semantics=("parallel", "parallel"),
            vmem_limit_bytes=vmem_limit_bytes,
        ),
    )(x2d, g_row)

    # Undo the lane-density plumbing.
    if pad_d:
        out_packed = out_packed[:, :dim]
    if rep > 1:
        out_packed = out_packed.reshape(-1, dim)
        if pad_rows:
            out_packed = out_packed[:rows]
    return out_packed.reshape(orig_shape)


if __name__ == "__main__":
    key = jax.random.PRNGKey(0)
    B, S, D = 2, 8, 32
    init_values = 1e-5

    x = jax.random.normal(key, (B, S, D), dtype=jnp.float32)
    # Deterministic parameter init matching nn.Parameter(init_values * ones(dim)).
    gamma = init_values * jnp.ones((D,), dtype=jnp.float32)

    out = layer_scale(x, gamma)
    out = jax.block_until_ready(out)

    # Reference check (same broadcasting/promotion as PyTorch `x * gamma`).
    ref = x * gamma
    assert out.shape == x.shape and out.dtype == ref.dtype
    assert jnp.allclose(out, ref, rtol=1e-6, atol=1e-6)

    # Extra small checks exercising the repack / pad / dtype-override paths.
    # 1) rows not a multiple of the repack factor (row-padding path).
    x2 = jax.random.normal(jax.random.PRNGKey(1), (3, 5, D), dtype=jnp.float32)
    assert jnp.allclose(layer_scale(x2, gamma), x2 * gamma, rtol=1e-6, atol=1e-6)

    # 2) odd hidden dim -> lane-padding path (no masked stores).
    g48 = init_values * jnp.ones((48,), dtype=jnp.float32)
    x3 = jax.random.normal(jax.random.PRNGKey(2), (2, 8, 48), dtype=jnp.float32)
    assert jnp.allclose(layer_scale(x3, g48), x3 * g48, rtol=1e-6, atol=1e-6)

    # 3) bf16 activations with f32 gamma: default promotes to f32 (PyTorch
    #    parity); opt-in bf16 output computes in f32 but stores bf16.
    g128 = init_values * jnp.ones((128,), dtype=jnp.float32)
    xb = jax.random.normal(jax.random.PRNGKey(3), (2, 8, 128), dtype=jnp.bfloat16)
    ref_b = xb.astype(jnp.float32) * g128
    out_f32 = layer_scale(xb, g128)
    assert out_f32.dtype == jnp.float32
    assert jnp.allclose(out_f32, ref_b, rtol=1e-6, atol=1e-6)
    out_bf16 = layer_scale(xb, g128, out_dtype=jnp.bfloat16)
    assert out_bf16.dtype == jnp.bfloat16
    assert jnp.allclose(out_bf16.astype(jnp.float32), ref_b, rtol=1e-2, atol=1e-2)

    print("KERNEL_OK")
</pallas_src>

<mosaic_0001>
module attributes {stable_mosaic.version = 11 : i64} {
  func.func @_layer_scale_kernel(%arg0: i32, %arg1: i32, %arg2: memref<4x128xf32, #tpu.memory_space<vmem>>, %arg3: memref<1x128xf32, #tpu.memory_space<vmem>>, %arg4: memref<4x128xf32, #tpu.memory_space<vmem>>) attributes {dimension_semantics = [#tpu.dimension_semantics<parallel>, #tpu.dimension_semantics<parallel>], iteration_bounds = array<i64: 1, 1>, scalar_prefetch = 0 : i64, scratch_operands = 0 : i64, tpu.core_type = #tpu.core_type<tc>, window_params = [{transform_indices = @transform_0, window_bounds = array<i64: 4, 128>}, {pipeline_mode = #tpu.pipeline_mode<synchronous>, transform_indices = @transform_1, window_bounds = array<i64: 1, 128>}, {transform_indices = @transform_2, window_bounds = array<i64: 4, 128>}]} {
    %c0 = arith.constant 0 : index
    %c0_0 = arith.constant 0 : index
    %0 = vector.load %arg3[%c0, %c0_0] : memref<1x128xf32, #tpu.memory_space<vmem>>, vector<1x128xf32>
    %c0_1 = arith.constant 0 : index
    %c0_2 = arith.constant 0 : index
    %1 = vector.load %arg2[%c0_1, %c0_2] : memref<4x128xf32, #tpu.memory_space<vmem>>, vector<4x128xf32>
    %2 = vector.broadcast %0 : vector<1x128xf32> to vector<4x128xf32>
    %3 = arith.mulf %1, %2 : vector<4x128xf32>
    %c0_3 = arith.constant 0 : index
    %c0_4 = arith.constant 0 : index
    %4 = vector.load %arg4[%c0_3, %c0_4] : memref<4x128xf32, #tpu.memory_space<vmem>>, vector<4x128xf32>
    tpu.vector_store %arg4[%c0_3, %c0_4], %3 {strides = array<i32>} : memref<4x128xf32, #tpu.memory_space<vmem>>, vector<4x128xf32>,
    return
  }
  func.func @transform_0(%arg0: i32, %arg1: i32) -> (i32, i32) {
    %c0_i32 = arith.constant 0 : i32
    return %arg0, %arg1 : i32, i32
  }
  func.func @transform_1(%arg0: i32, %arg1: i32) -> (i32, i32) {
    %c0_i32 = arith.constant 0 : i32
    %c0_i32_0 = arith.constant 0 : i32
    %c0_i32_1 = arith.constant 0 : i32
    return %c0_i32, %c0_i32_0 : i32, i32
  }
  func.func @transform_2(%arg0: i32, %arg1: i32) -> (i32, i32) {
    %c0_i32 = arith.constant 0 : i32
    return %arg0, %arg1 : i32, i32
  }
}

</mosaic_0001>

<llo_original>
// kernel: tpu_custom_call.1
$region0: #{tpu_custom_call.1}
  #allocation0 [shape = 'u32[]', space=smem, size = 0x4, offset = 0x4, fixed_abs, tag = 'smem constant byte address 0x4 - core index']
  #allocation1 [shape = 'u32[144,128]{1,0:T(1,128)}', space=vmem, size = 0x12000, scoped, tag = 'internal scratch']
  %s0 = inlined_call_operand.hbm [shape: f32[4,128], index: 0, kind: input, shape index: {}]
  %s1 = inlined_call_operand.vmem [shape: f32[1,128], index: 1, kind: input, shape index: {}]
  %s2 = inlined_call_operand.hbm [shape: f32[4,128], index: 2, kind: output, shape index: {}]
  %s3 = sld [smem:[#allocation0]]
  $region22: #{tpu_custom_call.1} parent=0
    _
  %s5 = ssub.s32 1, %s3
  %s6 = scalar_select 0, %s5, %s3
  $region1: #{tpu_custom_call.1} parent=0
    #allocation2 [shape = 'u8[2048]{0}', space=vmem, size = 0x800, scoped, tag = 'input window, operand 0, single buffered']
    #allocation3 [shape = 's32[1]{0}', space=sflag, size = 0x4, scoped, tag = 'scoped memory for tpu_custom_call.1']
    #allocation4 [shape = 's32[1]{0}', space=sflag, size = 0x4, scoped, tag = 'scoped memory for tpu_custom_call.1']
    #allocation5 [shape = 'u8[2048]{0}', space=vmem, size = 0x800, scoped, tag = 'output window, operand 0, single buffered']
    %7 = vsyncpa [#allocation3], 0
    %8 = vsyncpa [#allocation4], 0
    // Predicated region
    $region2: #{tpu_custom_call.1} parent=1 // pred_check
      _
    $region3: #{tpu_custom_call.1} parent=1 // pred_check_branch
      %10 = sbr.rel (0) target = $region5
    $region4: #{tpu_custom_call.1} parent=1 // pred_region
      %s12 = ssub.s32 64, 64
      %13 = vsyncadd [#allocation3], %s12
      %s15 = sshll.u32 [#allocation2], 4
      %s16 = int_to_ptr.vmem [resolvable:$true] %s15
      %18 = dma.hbm_to_vmem [thread:$0]  %s0, 64, %s16, [#allocation3]
    $region5: #{tpu_custom_call.1} parent=1 // pred_fallthru
      _
    // Predicated region
    $region6: #{tpu_custom_call.1} parent=1 // pred_check
      _
    $region7: #{tpu_custom_call.1} parent=1 // pred_check_branch
      %20 = sbr.rel (0) target = $region9
    $region8: #{tpu_custom_call.1} parent=1 // pred_region
      _
    $region9: #{tpu_custom_call.1} parent=1 // pred_fallthru
      _
    // Predicated region
    $region10: #{tpu_custom_call.1} parent=1 // pred_check
      _
    $region11: #{tpu_custom_call.1} parent=1 // pred_check_branch
      %22 = sbr.rel (0) target = $region13
    $region12: #{tpu_custom_call.1} parent=1 // pred_region
      %23 = dma.done [#allocation3], 64
    $region13: #{tpu_custom_call.1} parent=1 // pred_fallthru
      _
    %v24 = vld [vmem:[%s1] sm:$0x1]
    %v25 = vld [vmem:[#allocation2] sm:$0xf]
    %v27 = vlaneseq
    %v28 = vshrl.u32 %v27, 7
    %v29 = vsub.s32 0, %v28
    %v30 = vrot.slane %v24, %v29
    %v32 = vmul.f32 %v25, %v30
    %33 = vst [vmem:[#allocation5] sm:$0xf] %v32
    // Predicated region
    $region14: #{tpu_custom_call.1} parent=1 // pred_check
      _
    $region15: #{tpu_custom_call.1} parent=1 // pred_check_branch
      %35 = sbr.rel (0) target = $region17
    $region16: #{tpu_custom_call.1} parent=1 // pred_region
      %s37 = ssub.s32 64, 64
      %38 = vsyncadd [#allocation4], %s37
      %s40 = sshll.u32 [#allocation5], 4
      %s41 = int_to_ptr.vmem [resolvable:$true] %s40
      %43 = dma.vmem_to_hbm [thread:$0]  %s41, 64, %s2, [#allocation4]
    $region17: #{tpu_custom_call.1} parent=1 // pred_fallthru
      _
    // Predicated region
    $region18: #{tpu_custom_call.1} parent=1 // pred_check
      _
    $region19: #{tpu_custom_call.1} parent=1 // pred_check_branch
      %45 = sbr.rel (0) target = $region21
    $region20: #{tpu_custom_call.1} parent=1 // pred_region
      %46 = dma.done [#allocation4], 64
    $region21: #{tpu_custom_call.1} parent=1 // pred_fallthru
      _
    %47 = vsyncpa [#allocation3], 1
    %48 = vsyncpa [#allocation4], 1

</llo_original>
